<compile_context>
chip_gen: v7x
topology: tpu7x:2x2x1
jax: 0.10.0
libtpu: 0.0.40
codegen_flags: <defaults>
</compile_context>

<pallas_src>
import numpy as np
import jax
import jax.numpy as jnp
from jax.experimental import pallas as pl


# ----------------------------------------------------------------------------
# Pallas kernel: single invocation, all terms packed into fat 2-D matmuls.
# ----------------------------------------------------------------------------
def _lue_kernel(wrc_ref, wic_ref,        # (d, T*d)  column-stacked sqrt(p)*W_k
                d0r_ref, d0i_ref,        # (T*d, T*d) block-diagonal dm0
                whr_ref, whi_ref,        # (T*d, d)  row-stacked sqrt(p)*W_k^H
                d1r_ref, d1i_ref,        # (d, d)    target dm1
                loss_ref):               # (1, 1)    output
    f32 = jnp.float32
    wrc = wrc_ref[...]
    wic = wic_ref[...]
    d0r = d0r_ref[...]
    d0i = d0i_ref[...]
    whr = whr_ref[...]
    whi = whi_ref[...]

    # Stage 1: T'_k = sqrt(p_k) W_k @ dm0 for all k at once (column-stacked).
    trc = (jnp.dot(wrc, d0r, preferred_element_type=f32)
           - jnp.dot(wic, d0i, preferred_element_type=f32))     # (d, T*d)
    tic = (jnp.dot(wrc, d0i, preferred_element_type=f32)
           + jnp.dot(wic, d0r, preferred_element_type=f32))     # (d, T*d)

    # Stage 2: ret = sum_k T'_k @ (sqrt(p_k) W_k)^H.
    # The sum over k IS the (d,Td)@(Td,d) contraction -> accumulation in vregs.
    rr = (jnp.dot(trc, whr, preferred_element_type=f32)
          - jnp.dot(tic, whi, preferred_element_type=f32))      # (d, d)
    ri = (jnp.dot(trc, whi, preferred_element_type=f32)
          + jnp.dot(tic, whr, preferred_element_type=f32))      # (d, d)

    dr = rr - d1r_ref[...]
    di = ri - d1i_ref[...]
    # Frobenius norm squared of the complex difference.
    loss_ref[...] = jnp.sum(dr * dr + di * di, axis=(0, 1), keepdims=True)


def lue_loss(wr_cols, wi_cols, d0r_bd, d0i_bd, whr_rows, whi_rows, d1r, d1i):
    # Single invocation, no grid: every operand is one full-array VMEM block.
    loss = pl.pallas_call(
        _lue_kernel,
        out_shape=jax.ShapeDtypeStruct((1, 1), jnp.float32),
    )(wr_cols, wi_cols, d0r_bd, d0i_bd, whr_rows, whi_rows, d1r, d1i)
    return loss[0, 0]


# ----------------------------------------------------------------------------
# Host-side packing (numpy, setup time — analogous to weight preprocessing).
# ----------------------------------------------------------------------------
def pack_inputs(prob, w, dm0, dm1):
    num_term, d, _ = w.shape
    w_s = w * np.sqrt(prob)[:, None, None]            # fold sqrt(prob) into W
    # column-stacked [W_1 | ... | W_T]  -> (d, T*d)
    wr_cols = np.transpose(w_s.real, (1, 0, 2)).reshape(d, num_term * d)
    wi_cols = np.transpose(w_s.imag, (1, 0, 2)).reshape(d, num_term * d)
    # row-stacked [W_1^H; ...; W_T^H]  -> (T*d, d), with W^H = Wr^T - i*Wi^T
    whr_rows = np.swapaxes(w_s.real, 1, 2).reshape(num_term * d, d)
    whi_rows = (-np.swapaxes(w_s.imag, 1, 2)).reshape(num_term * d, d)
    # block-diagonal replication of dm0 so stage 1 is one fat matmul per plane
    eye_t = np.eye(num_term)
    d0r_bd = np.kron(eye_t, dm0.real)
    d0i_bd = np.kron(eye_t, dm0.imag)
    to = lambda a: jnp.asarray(a, jnp.float32)
    return (to(wr_cols), to(wi_cols), to(d0r_bd), to(d0i_bd),
            to(whr_rows), to(whi_rows), to(dm1.real), to(dm1.imag))


# ----------------------------------------------------------------------------
# Deterministic parameter construction (host-side glue, numpy complex128).
# TODO(synk): numqi's SpecialOrthogonal uses a matrix-exponential
#   parametrization; here a Cayley transform of a complex antisymmetric matrix
#   is used for deterministic host-side init (also yields Q^T Q = I, det = 1).
# ----------------------------------------------------------------------------
def special_orthogonal_complex(key, n, batch):
    kr, ki = jax.random.split(key)
    xr = np.asarray(jax.random.normal(kr, (batch, n, n)), dtype=np.float64)
    xi = np.asarray(jax.random.normal(ki, (batch, n, n)), dtype=np.float64)
    x = (xr + 1j * xi) * 0.3
    a = x - np.swapaxes(x, -1, -2)                      # complex antisymmetric
    eye = np.eye(n, dtype=np.complex128)
    q = np.linalg.solve(eye - a, np.broadcast_to(eye, a.shape) + a)
    return q                                            # (batch, n, n)


def random_density_matrix(key, d):
    kr, ki = jax.random.split(key)
    xr = np.asarray(jax.random.normal(kr, (d, d)), dtype=np.float64)
    xi = np.asarray(jax.random.normal(ki, (d, d)), dtype=np.float64)
    x = xr + 1j * xi
    h = x @ x.conj().T
    return h / np.trace(h).real


if __name__ == "__main__":
    dimA, dimB, num_term = 4, 8, 3
    d = dimA * dimB

    key = jax.random.PRNGKey(0)
    k0, k1, k2, k3, k4 = jax.random.split(key, 5)

    u0 = special_orthogonal_complex(k0, dimA, num_term)          # (T, dA, dA)
    u1 = special_orthogonal_complex(k1, dimB, num_term)          # (T, dB, dB)
    prob = np.asarray(jax.nn.softmax(jax.random.normal(k2, (num_term,))),
                      dtype=np.float64)
    dm0 = random_density_matrix(k3, d)
    dm1 = random_density_matrix(k4, d)

    # W_k = kron(U0_k, U1_k) -- equivalent to the einsum's index grouping.
    w = np.einsum('kij,kab->kiajb', u0, u1).reshape(num_term, d, d)

    args = pack_inputs(prob, w, dm0, dm1)
    loss = jax.block_until_ready(lue_loss(*args))

    # complex128 reference of the exact torch einsum
    dm0_4 = dm0.reshape(dimA, dimB, dimA, dimB)
    ret_ref = np.einsum('abcd,kea,kfc,kgb,khd,k->egfh',
                        dm0_4, u0, u0.conj(), u1, u1.conj(), prob).reshape(d, d)
    tmp = (ret_ref - dm1).reshape(-1)
    loss_ref = np.vdot(tmp, tmp).real

    assert np.isfinite(float(loss))
    rel_err = abs(float(loss) - loss_ref) / max(abs(loss_ref), 1e-12)
    assert rel_err < 5e-2, (float(loss), loss_ref, rel_err)
    print("KERNEL_OK")
</pallas_src>

<mosaic_0001>
module attributes {stable_mosaic.version = 11 : i64} {
  func.func @_lue_kernel(%arg0: memref<32x96xf32, #tpu.memory_space<vmem>>, %arg1: memref<32x96xf32, #tpu.memory_space<vmem>>, %arg2: memref<96x96xf32, #tpu.memory_space<vmem>>, %arg3: memref<96x96xf32, #tpu.memory_space<vmem>>, %arg4: memref<96x32xf32, #tpu.memory_space<vmem>>, %arg5: memref<96x32xf32, #tpu.memory_space<vmem>>, %arg6: memref<32x32xf32, #tpu.memory_space<vmem>>, %arg7: memref<32x32xf32, #tpu.memory_space<vmem>>, %arg8: memref<1x1xf32, #tpu.memory_space<vmem>>) attributes {dimension_semantics = [], scalar_prefetch = 0 : i64, scratch_operands = 0 : i64, tpu.core_type = #tpu.core_type<tc>} {
    %c0 = arith.constant 0 : index
    %c0_0 = arith.constant 0 : index
    %0 = vector.load %arg0[%c0, %c0_0] : memref<32x96xf32, #tpu.memory_space<vmem>>, vector<32x96xf32>
    %c0_1 = arith.constant 0 : index
    %c0_2 = arith.constant 0 : index
    %1 = vector.load %arg1[%c0_1, %c0_2] : memref<32x96xf32, #tpu.memory_space<vmem>>, vector<32x96xf32>
    %c0_3 = arith.constant 0 : index
    %c0_4 = arith.constant 0 : index
    %2 = vector.load %arg2[%c0_3, %c0_4] : memref<96x96xf32, #tpu.memory_space<vmem>>, vector<96x96xf32>
    %c0_5 = arith.constant 0 : index
    %c0_6 = arith.constant 0 : index
    %3 = vector.load %arg3[%c0_5, %c0_6] : memref<96x96xf32, #tpu.memory_space<vmem>>, vector<96x96xf32>
    %c0_7 = arith.constant 0 : index
    %c0_8 = arith.constant 0 : index
    %4 = vector.load %arg4[%c0_7, %c0_8] : memref<96x32xf32, #tpu.memory_space<vmem>>, vector<96x32xf32>
    %c0_9 = arith.constant 0 : index
    %c0_10 = arith.constant 0 : index
    %5 = vector.load %arg5[%c0_9, %c0_10] : memref<96x32xf32, #tpu.memory_space<vmem>>, vector<96x32xf32>
    %cst = arith.constant dense<0.000000e+00> : vector<32x96xf32>
    %6 = tpu.matmul %0, %2, %cst {dimension_numbers = #tpu.dot_dimension_numbers<[1], [0], [0], [1], [0, 0, 1, 1], [], []>} : vector<32x96xf32>, vector<96x96xf32>, vector<32x96xf32> -> vector<32x96xf32>
    %cst_11 = arith.constant dense<0.000000e+00> : vector<32x96xf32>
    %7 = tpu.matmul %1, %3, %cst_11 {dimension_numbers = #tpu.dot_dimension_numbers<[1], [0], [0], [1], [0, 0, 1, 1], [], []>} : vector<32x96xf32>, vector<96x96xf32>, vector<32x96xf32> -> vector<32x96xf32>
    %8 = arith.subf %6, %7 : vector<32x96xf32>
    %cst_12 = arith.constant dense<0.000000e+00> : vector<32x96xf32>
    %9 = tpu.matmul %0, %3, %cst_12 {dimension_numbers = #tpu.dot_dimension_numbers<[1], [0], [0], [1], [0, 0, 1, 1], [], []>} : vector<32x96xf32>, vector<96x96xf32>, vector<32x96xf32> -> vector<32x96xf32>
    %cst_13 = arith.constant dense<0.000000e+00> : vector<32x96xf32>
    %10 = tpu.matmul %1, %2, %cst_13 {dimension_numbers = #tpu.dot_dimension_numbers<[1], [0], [0], [1], [0, 0, 1, 1], [], []>} : vector<32x96xf32>, vector<96x96xf32>, vector<32x96xf32> -> vector<32x96xf32>
    %11 = arith.addf %9, %10 : vector<32x96xf32>
    %cst_14 = arith.constant dense<0.000000e+00> : vector<32x32xf32>
    %12 = tpu.matmul %8, %4, %cst_14 {dimension_numbers = #tpu.dot_dimension_numbers<[1], [0], [0], [1], [0, 0, 1, 1], [], []>} : vector<32x96xf32>, vector<96x32xf32>, vector<32x32xf32> -> vector<32x32xf32>
    %cst_15 = arith.constant dense<0.000000e+00> : vector<32x32xf32>
    %13 = tpu.matmul %11, %5, %cst_15 {dimension_numbers = #tpu.dot_dimension_numbers<[1], [0], [0], [1], [0, 0, 1, 1], [], []>} : vector<32x96xf32>, vector<96x32xf32>, vector<32x32xf32> -> vector<32x32xf32>
    %14 = arith.subf %12, %13 : vector<32x32xf32>
    %cst_16 = arith.constant dense<0.000000e+00> : vector<32x32xf32>
    %15 = tpu.matmul %8, %5, %cst_16 {dimension_numbers = #tpu.dot_dimension_numbers<[1], [0], [0], [1], [0, 0, 1, 1], [], []>} : vector<32x96xf32>, vector<96x32xf32>, vector<32x32xf32> -> vector<32x32xf32>
    %cst_17 = arith.constant dense<0.000000e+00> : vector<32x32xf32>
    %16 = tpu.matmul %11, %4, %cst_17 {dimension_numbers = #tpu.dot_dimension_numbers<[1], [0], [0], [1], [0, 0, 1, 1], [], []>} : vector<32x96xf32>, vector<96x32xf32>, vector<32x32xf32> -> vector<32x32xf32>
    %17 = arith.addf %15, %16 : vector<32x32xf32>
    %c0_18 = arith.constant 0 : index
    %c0_19 = arith.constant 0 : index
    %18 = vector.load %arg6[%c0_18, %c0_19] : memref<32x32xf32, #tpu.memory_space<vmem>>, vector<32x32xf32>
    %19 = arith.subf %14, %18 : vector<32x32xf32>
    %c0_20 = arith.constant 0 : index
    %c0_21 = arith.constant 0 : index
    %20 = vector.load %arg7[%c0_20, %c0_21] : memref<32x32xf32, #tpu.memory_space<vmem>>, vector<32x32xf32>
    %21 = arith.subf %17, %20 : vector<32x32xf32>
    %22 = arith.mulf %19, %19 : vector<32x32xf32>
    %23 = arith.mulf %21, %21 : vector<32x32xf32>
    %24 = arith.addf %22, %23 : vector<32x32xf32>
    %25 = vector.shape_cast %24 : vector<32x32xf32> to vector<1x32x32xf32>
    %cst_22 = arith.constant dense<0.000000e+00> : vector<1xf32>
    %26 = vector.multi_reduction <add>, %25, %cst_22 [1, 2] : vector<1x32x32xf32> to vector<1xf32>
    %27 = vector.shape_cast %26 : vector<1xf32> to vector<1x1x1xf32>
    %28 = vector.extract %27[0, 0, 0] : f32 from vector<1x1x1xf32>
    %29 = vector.broadcast %28 : f32 to vector<1x1xf32>
    %c0_23 = arith.constant 0 : index
    %c0_24 = arith.constant 0 : index
    %30 = vector.load %arg8[%c0_23, %c0_24] : memref<1x1xf32, #tpu.memory_space<vmem>>, vector<1x1xf32>
    tpu.vector_store %arg8[%c0_23, %c0_24], %29 {strides = array<i32>} : memref<1x1xf32, #tpu.memory_space<vmem>>, vector<1x1xf32>,
    return
  }
}

</mosaic_0001>

<llo_original>
// kernel: tpu_custom_call.1
$region0: #{tpu_custom_call.1}
  #allocation0 [shape = 'u32[]', space=smem, size = 0x4, offset = 0x4, fixed_abs, tag = 'smem constant byte address 0x4 - core index']
  #allocation1 [shape = 'u32[144,128]{1,0:T(1,128)}', space=vmem, size = 0x12000, scoped, tag = 'internal scratch']
  %s0 = inlined_call_operand.vmem [shape: f32[32,96], index: 0, kind: input, shape index: {}]
  %s1 = inlined_call_operand.vmem [shape: f32[32,96], index: 1, kind: input, shape index: {}]
  %s2 = inlined_call_operand.vmem [shape: f32[96,96], index: 2, kind: input, shape index: {}]
  %s3 = inlined_call_operand.vmem [shape: f32[96,96], index: 3, kind: input, shape index: {}]
  %s4 = inlined_call_operand.vmem [shape: f32[96,32], index: 4, kind: input, shape index: {}]
  %s5 = inlined_call_operand.vmem [shape: f32[96,32], index: 5, kind: input, shape index: {}]
  %s6 = inlined_call_operand.hbm [shape: f32[32,32], index: 6, kind: input, shape index: {}]
  %s7 = inlined_call_operand.hbm [shape: f32[32,32], index: 7, kind: input, shape index: {}]
  %s8 = inlined_call_operand.hbm [shape: f32[1,1], index: 8, kind: output, shape index: {}]
  %s9 = sld [smem:[#allocation0]]
  $region50: #{tpu_custom_call.1} parent=0
    _
  %s11 = ssub.s32 1, %s9
  %s12 = scalar_select 0, %s11, %s9
  $region1: #{tpu_custom_call.1} parent=0
    #allocation2 [shape = 'u8[16384]{0}', space=vmem, size = 0x4000, scoped, tag = 'input window, operand 6, single buffered']
    #allocation3 [shape = 's32[1]{0}', space=sflag, size = 0x4, scoped, tag = 'scoped memory for tpu_custom_call.1']
    #allocation4 [shape = 's32[1]{0}', space=sflag, size = 0x4, scoped, tag = 'scoped memory for tpu_custom_call.1']
    #allocation5 [shape = 'u8[16384]{0}', space=vmem, size = 0x4000, scoped, tag = 'input window, operand 7, single buffered']
    #allocation6 [shape = 's32[1]{0}', space=sflag, size = 0x4, scoped, tag = 'scoped memory for tpu_custom_call.1']
    #allocation7 [shape = 'u8[512]{0}', space=vmem, size = 0x400, scoped, tag = 'output window, operand 0, single buffered']
    %13 = vsyncpa [#allocation3], 0
    %14 = vsyncpa [#allocation6], 0
    %15 = vsyncpa [#allocation4], 0
    // Predicated region
    $region2: #{tpu_custom_call.1} parent=1 // pred_check
      _
    $region3: #{tpu_custom_call.1} parent=1 // pred_check_branch
      %17 = sbr.rel (0) target = $region5
    $region4: #{tpu_custom_call.1} parent=1 // pred_region
      _
    $region5: #{tpu_custom_call.1} parent=1 // pred_fallthru
      _
    // Predicated region
    $region6: #{tpu_custom_call.1} parent=1 // pred_check
      _
    $region7: #{tpu_custom_call.1} parent=1 // pred_check_branch
      %19 = sbr.rel (0) target = $region9
    $region8: #{tpu_custom_call.1} parent=1 // pred_region
      _
    $region9: #{tpu_custom_call.1} parent=1 // pred_fallthru
      _
    // Predicated region
    $region10: #{tpu_custom_call.1} parent=1 // pred_check
      _
    $region11: #{tpu_custom_call.1} parent=1 // pred_check_branch
      %21 = sbr.rel (0) target = $region13
    $region12: #{tpu_custom_call.1} parent=1 // pred_region
      _
    $region13: #{tpu_custom_call.1} parent=1 // pred_fallthru
      _
    // Predicated region
    $region14: #{tpu_custom_call.1} parent=1 // pred_check
      _
    $region15: #{tpu_custom_call.1} parent=1 // pred_check_branch
      %23 = sbr.rel (0) target = $region17
    $region16: #{tpu_custom_call.1} parent=1 // pred_region
      _
    $region17: #{tpu_custom_call.1} parent=1 // pred_fallthru
      _
    // Predicated region
    $region18: #{tpu_custom_call.1} parent=1 // pred_check
      _
    $region19: #{tpu_custom_call.1} parent=1 // pred_check_branch
      %25 = sbr.rel (0) target = $region21
    $region20: #{tpu_custom_call.1} parent=1 // pred_region
      _
    $region21: #{tpu_custom_call.1} parent=1 // pred_fallthru
      _
    // Predicated region
    $region22: #{tpu_custom_call.1} parent=1 // pred_check
      _
    $region23: #{tpu_custom_call.1} parent=1 // pred_check_branch
      %27 = sbr.rel (0) target = $region25
    $region24: #{tpu_custom_call.1} parent=1 // pred_region
      _
    $region25: #{tpu_custom_call.1} parent=1 // pred_fallthru
      _
    // Predicated region
    $region26: #{tpu_custom_call.1} parent=1 // pred_check
      _
    $region27: #{tpu_custom_call.1} parent=1 // pred_check_branch
      %29 = sbr.rel (0) target = $region29
    $region28: #{tpu_custom_call.1} parent=1 // pred_region
      %s31 = ssub.s32 512, 512
      %32 = vsyncadd [#allocation3], %s31
      %s33 = sshll.u32 [#allocation2], 4
      %s34 = int_to_ptr.vmem [resolvable:$true] %s33
      %39 = dma.hbm_to_vmem [thread:$0]  %s6, 512, %s34, [#allocation3], 128, 128, 8
    $region29: #{tpu_custom_call.1} parent=1 // pred_fallthru
      _
    // Predicated region
    $region30: #{tpu_custom_call.1} parent=1 // pred_check
      _
    $region31: #{tpu_custom_call.1} parent=1 // pred_check_branch
      %41 = sbr.rel (0) target = $region33
    $region32: #{tpu_custom_call.1} parent=1 // pred_region
      %s43 = ssub.s32 512, 512
      %44 = vsyncadd [#allocation6], %s43
      %s45 = sshll.u32 [#allocation5], 4
      %s46 = int_to_ptr.vmem [resolvable:$true] %s45
      %51 = dma.hbm_to_vmem [thread:$0]  %s7, 512, %s46, [#allocation6], 128, 128, 8
    $region33: #{tpu_custom_call.1} parent=1 // pred_fallthru
      _
    // Predicated region
    $region34: #{tpu_custom_call.1} parent=1 // pred_check
      _
    $region35: #{tpu_custom_call.1} parent=1 // pred_check_branch
      %53 = sbr.rel (0) target = $region37
    $region36: #{tpu_custom_call.1} parent=1 // pred_region
      %54 = dma.done [#allocation3], 512
    $region37: #{tpu_custom_call.1} parent=1 // pred_fallthru
      _
    // Predicated region
    $region38: #{tpu_custom_call.1} parent=1 // pred_check
      _
    $region39: #{tpu_custom_call.1} parent=1 // pred_check_branch
      %56 = sbr.rel (0) target = $region41
    $region40: #{tpu_custom_call.1} parent=1 // pred_region
      %57 = dma.done [#allocation6], 512
    $region41: #{tpu_custom_call.1} parent=1 // pred_fallthru
      _
    %v58 = vld [vmem:[%s0] sm:$0xff]
    %v59 = vld [vmem:[%s0 + $0x8] sm:$0xff]
    %v60 = vld [vmem:[%s0 + $0x10] sm:$0xff]
    %v61 = vld [vmem:[%s0 + $0x18] sm:$0xff]
    %v62 = vld [vmem:[%s1] sm:$0xff]
    %v63 = vld [vmem:[%s1 + $0x8] sm:$0xff]
    %v64 = vld [vmem:[%s1 + $0x10] sm:$0xff]
    %v65 = vld [vmem:[%s1 + $0x18] sm:$0xff]
    %v66 = vld [vmem:[%s2] sm:$0xff]
    %v67 = vld [vmem:[%s2 + $0x8] sm:$0xff]
    %v68 = vld [vmem:[%s2 + $0x10] sm:$0xff]
    %v69 = vld [vmem:[%s2 + $0x18] sm:$0xff]
    %v70 = vld [vmem:[%s2 + $0x20] sm:$0xff]
    %v71 = vld [vmem:[%s2 + $0x28] sm:$0xff]
    %v72 = vld [vmem:[%s2 + $0x30] sm:$0xff]
    %v73 = vld [vmem:[%s2 + $0x38] sm:$0xff]
    %v74 = vld [vmem:[%s2 + $0x40] sm:$0xff]
    %v75 = vld [vmem:[%s2 + $0x48] sm:$0xff]
    %v76 = vld [vmem:[%s2 + $0x50] sm:$0xff]
    %v77 = vld [vmem:[%s2 + $0x58] sm:$0xff]
    %v78 = vld [vmem:[%s3] sm:$0xff]
    %v79 = vld [vmem:[%s3 + $0x8] sm:$0xff]
    %v80 = vld [vmem:[%s3 + $0x10] sm:$0xff]
    %v81 = vld [vmem:[%s3 + $0x18] sm:$0xff]
    %v82 = vld [vmem:[%s3 + $0x20] sm:$0xff]
    %v83 = vld [vmem:[%s3 + $0x28] sm:$0xff]
    %v84 = vld [vmem:[%s3 + $0x30] sm:$0xff]
    %v85 = vld [vmem:[%s3 + $0x38] sm:$0xff]
    %v86 = vld [vmem:[%s3 + $0x40] sm:$0xff]
    %v87 = vld [vmem:[%s3 + $0x48] sm:$0xff]
    %v88 = vld [vmem:[%s3 + $0x50] sm:$0xff]
    %v89 = vld [vmem:[%s3 + $0x58] sm:$0xff]
    %v90 = vld [vmem:[%s4] sm:$0xff]
    %v91 = vld [vmem:[%s4 + $0x8] sm:$0xff]
    %v92 = vld [vmem:[%s4 + $0x10] sm:$0xff]
    %v93 = vld [vmem:[%s4 + $0x18] sm:$0xff]
    %v94 = vld [vmem:[%s4 + $0x20] sm:$0xff]
    %v95 = vld [vmem:[%s4 + $0x28] sm:$0xff]
    %v96 = vld [vmem:[%s4 + $0x30] sm:$0xff]
    %v97 = vld [vmem:[%s4 + $0x38] sm:$0xff]
    %v98 = vld [vmem:[%s4 + $0x40] sm:$0xff]
    %v99 = vld [vmem:[%s4 + $0x48] sm:$0xff]
    %v100 = vld [vmem:[%s4 + $0x50] sm:$0xff]
    %v101 = vld [vmem:[%s4 + $0x58] sm:$0xff]
    %v102 = vld [vmem:[%s5] sm:$0xff]
    %v103 = vld [vmem:[%s5 + $0x8] sm:$0xff]
    %v104 = vld [vmem:[%s5 + $0x10] sm:$0xff]
    %v105 = vld [vmem:[%s5 + $0x18] sm:$0xff]
    %v106 = vld [vmem:[%s5 + $0x20] sm:$0xff]
    %v107 = vld [vmem:[%s5 + $0x28] sm:$0xff]
    %v108 = vld [vmem:[%s5 + $0x30] sm:$0xff]
    %v109 = vld [vmem:[%s5 + $0x38] sm:$0xff]
    %v110 = vld [vmem:[%s5 + $0x40] sm:$0xff]
    %v111 = vld [vmem:[%s5 + $0x48] sm:$0xff]
    %v112 = vld [vmem:[%s5 + $0x50] sm:$0xff]
    %v113 = vld [vmem:[%s5 + $0x58] sm:$0xff]
    %vm114 = vcmask 785408
    %v116 = vsel %vm114, %v58, 0
    %v119 = vsel %vm114, %v59, 0
    %v122 = vsel %vm114, %v60, 0
    %v125 = vsel %vm114, %v61, 0
    %127 = vmatprep.subr.mxu0 0.0
    %128 = vmatpush1.msra.mxu0 %v66
    %129 = vmatprep.subr.mxu0 0.0
    %130 = vmatpush1.msra.mxu0 %v67
    %131 = vmatprep.subr.mxu0 0.0
    %132 = vmatpush1.msra.mxu0 %v68
    %133 = vmatprep.subr.mxu0 0.0
    %134 = vmatpush1.msra.mxu0 %v69
    %135 = vmatprep.subr.mxu0 0.0
    %136 = vmatpush1.msra.mxu0 %v70
    %137 = vmatprep.subr.mxu0 0.0
    %138 = vmatpush1.msra.mxu0 %v71
    %139 = vmatprep.subr.mxu0 0.0
    %140 = vmatpush1.msra.mxu0 %v72
    %141 = vmatprep.subr.mxu0 0.0
    %142 = vmatpush1.msra.mxu0 %v73
    %143 = vmatprep.subr.mxu0 0.0
    %144 = vmatpush1.msra.mxu0 %v74
    %145 = vmatprep.subr.mxu0 0.0
    %146 = vmatpush1.msra.mxu0 %v75
    %147 = vmatprep.subr.mxu0 0.0
    %148 = vmatpush1.msra.mxu0 %v76
    %149 = vmatprep.subr.mxu0 0.0
    %150 = vmatpush1.msra.mxu0 %v77
    %151 = vmatprep.subr.mxu0 0.0
    %152 = vmatpush1.msra.mxu0 0.0
    %153 = vmatprep.subr.mxu0 0.0
    %154 = vmatpush1.msra.mxu0 0.0
    %155 = vmatprep.subr.mxu0 0.0
    %156 = vmatpush1.msra.mxu0 0.0
    %157 = vmatprep.subr.mxu0 0.0
    %158 = vmatpush1.msra.mxu0 0.0
    %159 = vmatprep.subr.mxu0 0.0
    %160 = vmatpush1.msra.mxu0 0.0
    %161 = vmatprep.subr.mxu0 0.0
    %162 = vmatpush1.msra.mxu0 0.0
    %163 = vmatprep.subr.mxu0 0.0
    %164 = vmatpush1.msra.mxu0 0.0
    %165 = vmatprep.subr.mxu0 0.0
    %166 = vmatpush1.msra.mxu0 0.0
    %167 = vmatprep.subr.mxu0 0.0
    %168 = vmatpush1.msra.mxu0 0.0
    %169 = vmatprep.subr.mxu0 0.0
    %170 = vmatpush1.msra.mxu0 0.0
    %171 = vmatprep.subr.mxu0 0.0
    %172 = vmatpush1.msra.mxu0 0.0
    %173 = vmatprep.subr.mxu0 0.0
    %174 = vmatpush1.msra.mxu0 0.0
    %175 = vmatprep.subr.mxu0 0.0
    %176 = vmatpush1.msra.mxu0 0.0
    %177 = vmatprep.subr.mxu0 0.0
    %178 = vmatpush1.msra.mxu0 0.0
    %179 = vmatprep.subr.mxu0 0.0
    %180 = vmatpush1.msra.mxu0 0.0
    %181 = vmatprep.subr.mxu0 0.0
    %182 = vmatpush1.msra.mxu0 0.0
    %183 = vmatprep.subr.mxu0 0.0
    %184 = vmatpush1.msra.mxu0 0.0
    %185 = vmatprep.subr.mxu0 0.0
    %186 = vmatpush1.msra.mxu0 0.0
    %187 = vmatprep.subr.mxu0 0.0
    %188 = vmatpush1.msra.mxu0 0.0
    %189 = vmatprep.subr.mxu0 0.0
    %190 = vmatpush1.msra.mxu0 0.0
    %191 = vmatprep.mubr.f32.mxu0 0.0
    %192 = vmatmul.mubr.f32.gmra.mrb[0].mxu0 %v116
    %v193 = vpop.f32.mrb[0].mxu0
    %v194 = vadd.f32 0.0, %v193
    %v195 = vpop.f32.mrb[0].mxu0
    %196 = vmatprep.mubr.f32.mxu0 0.0
    %197 = vmatmul.mubr.f32.gmra.mrb[0].mxu0 %v119
    %v198 = vpop.f32.mrb[0].mxu0
    %v199 = vadd.f32 0.0, %v198
    %v200 = vpop.f32.mrb[0].mxu0
    %201 = vmatprep.mubr.f32.mxu0 0.0
    %202 = vmatmul.mubr.f32.gmra.mrb[0].mxu0 %v122
    %v203 = vpop.f32.mrb[0].mxu0
    %v204 = vadd.f32 0.0, %v203
    %v205 = vpop.f32.mrb[0].mxu0
    %206 = vmatprep.mubr.f32.mxu0 0.0
    %207 = vmatmul.mubr.f32.gmra.mrb[0].mxu0 %v125
    %v208 = vpop.f32.mrb[0].mxu0
    %v209 = vadd.f32 0.0, %v208
    %v210 = vpop.f32.mrb[0].mxu0
    %211 = vdwg.mxu0
    %v213 = vsel %vm114, %v62, 0
    %v216 = vsel %vm114, %v63, 0
    %v219 = vsel %vm114, %v64, 0
    %v222 = vsel %vm114, %v65, 0
    %224 = vmatprep.subr.mxu0 0.0
    %225 = vmatpush1.msra.mxu0 %v78
    %226 = vmatprep.subr.mxu0 0.0
    %227 = vmatpush1.msra.mxu0 %v79
    %228 = vmatprep.subr.mxu0 0.0
    %229 = vmatpush1.msra.mxu0 %v80
    %230 = vmatprep.subr.mxu0 0.0
    %231 = vmatpush1.msra.mxu0 %v81
    %232 = vmatprep.subr.mxu0 0.0
    %233 = vmatpush1.msra.mxu0 %v82
    %234 = vmatprep.subr.mxu0 0.0
    %235 = vmatpush1.msra.mxu0 %v83
    %236 = vmatprep.subr.mxu0 0.0
    %237 = vmatpush1.msra.mxu0 %v84
    %238 = vmatprep.subr.mxu0 0.0
    %239 = vmatpush1.msra.mxu0 %v85
    %240 = vmatprep.subr.mxu0 0.0
    %241 = vmatpush1.msra.mxu0 %v86
    %242 = vmatprep.subr.mxu0 0.0
    %243 = vmatpush1.msra.mxu0 %v87
    %244 = vmatprep.subr.mxu0 0.0
    %245 = vmatpush1.msra.mxu0 %v88
    %246 = vmatprep.subr.mxu0 0.0
    %247 = vmatpush1.msra.mxu0 %v89
    %248 = vmatprep.subr.mxu0 0.0
    %249 = vmatpush1.msra.mxu0 0.0
    %250 = vmatprep.subr.mxu0 0.0
    %251 = vmatpush1.msra.mxu0 0.0
    %252 = vmatprep.subr.mxu0 0.0
    %253 = vmatpush1.msra.mxu0 0.0
    %254 = vmatprep.subr.mxu0 0.0
    %255 = vmatpush1.msra.mxu0 0.0
    %256 = vmatprep.subr.mxu0 0.0
    %257 = vmatpush1.msra.mxu0 0.0
    %258 = vmatprep.subr.mxu0 0.0
    %259 = vmatpush1.msra.mxu0 0.0
    %260 = vmatprep.subr.mxu0 0.0
    %261 = vmatpush1.msra.mxu0 0.0
    %262 = vmatprep.subr.mxu0 0.0
    %263 = vmatpush1.msra.mxu0 0.0
    %264 = vmatprep.subr.mxu0 0.0
    %265 = vmatpush1.msra.mxu0 0.0
    %266 = vmatprep.subr.mxu0 0.0
    %267 = vmatpush1.msra.mxu0 0.0
    %268 = vmatprep.subr.mxu0 0.0
    %269 = vmatpush1.msra.mxu0 0.0
    %270 = vmatprep.subr.mxu0 0.0
    %271 = vmatpush1.msra.mxu0 0.0
    %272 = vmatprep.subr.mxu0 0.0
    %273 = vmatpush1.msra.mxu0 0.0
    %274 = vmatprep.subr.mxu0 0.0
    %275 = vmatpush1.msra.mxu0 0.0
    %276 = vmatprep.subr.mxu0 0.0
    %277 = vmatpush1.msra.mxu0 0.0
    %278 = vmatprep.subr.mxu0 0.0
    %279 = vmatpush1.msra.mxu0 0.0
    %280 = vmatprep.subr.mxu0 0.0
    %281 = vmatpush1.msra.mxu0 0.0
    %282 = vmatprep.subr.mxu0 0.0
    %283 = vmatpush1.msra.mxu0 0.0
    %284 = vmatprep.subr.mxu0 0.0
    %285 = vmatpush1.msra.mxu0 0.0
    %286 = vmatprep.subr.mxu0 0.0
    %287 = vmatpush1.msra.mxu0 0.0
    %288 = vmatprep.mubr.f32.mxu0 0.0
    %289 = vmatmul.mubr.f32.gmra.mrb[0].mxu0 %v213
    %v290 = vpop.f32.mrb[0].mxu0
    %v291 = vadd.f32 0.0, %v290
    %v292 = vpop.f32.mrb[0].mxu0
    %293 = vmatprep.mubr.f32.mxu0 0.0
    %294 = vmatmul.mubr.f32.gmra.mrb[0].mxu0 %v216
    %v295 = vpop.f32.mrb[0].mxu0
    %v296 = vadd.f32 0.0, %v295
    %v297 = vpop.f32.mrb[0].mxu0
    %298 = vmatprep.mubr.f32.mxu0 0.0
    %299 = vmatmul.mubr.f32.gmra.mrb[0].mxu0 %v219
    %v300 = vpop.f32.mrb[0].mxu0
    %v301 = vadd.f32 0.0, %v300
    %v302 = vpop.f32.mrb[0].mxu0
    %303 = vmatprep.mubr.f32.mxu0 0.0
    %304 = vmatmul.mubr.f32.gmra.mrb[0].mxu0 %v222
    %v305 = vpop.f32.mrb[0].mxu0
    %v306 = vadd.f32 0.0, %v305
    %v307 = vpop.f32.mrb[0].mxu0
    %308 = vdwg.mxu0
    %v309 = vsub.f32 %v194, %v291
    %v310 = vsub.f32 %v199, %v296
    %v311 = vsub.f32 %v204, %v301
    %v312 = vsub.f32 %v209, %v306
    %313 = vmatprep.subr.mxu0 0.0
    %314 = vmatpush1.msra.mxu0 %v66
    %315 = vmatprep.subr.mxu0 0.0
    %316 = vmatpush1.msra.mxu0 %v67
    %317 = vmatprep.subr.mxu0 0.0
    %318 = vmatpush1.msra.mxu0 %v68
    %319 = vmatprep.subr.mxu0 0.0
    %320 = vmatpush1.msra.mxu0 %v69
    %321 = vmatprep.subr.mxu0 0.0
    %322 = vmatpush1.msra.mxu0 %v70
    %323 = vmatprep.subr.mxu0 0.0
    %324 = vmatpush1.msra.mxu0 %v71
    %325 = vmatprep.subr.mxu0 0.0
    %326 = vmatpush1.msra.mxu0 %v72
    %327 = vmatprep.subr.mxu0 0.0
    %328 = vmatpush1.msra.mxu0 %v73
    %329 = vmatprep.subr.mxu0 0.0
    %330 = vmatpush1.msra.mxu0 %v74
    %331 = vmatprep.subr.mxu0 0.0
    %332 = vmatpush1.msra.mxu0 %v75
    %333 = vmatprep.subr.mxu0 0.0
    %334 = vmatpush1.msra.mxu0 %v76
    %335 = vmatprep.subr.mxu0 0.0
    %336 = vmatpush1.msra.mxu0 %v77
    %337 = vmatprep.subr.mxu0 0.0
    %338 = vmatpush1.msra.mxu0 0.0
    %339 = vmatprep.subr.mxu0 0.0
    %340 = vmatpush1.msra.mxu0 0.0
    %341 = vmatprep.subr.mxu0 0.0
    %342 = vmatpush1.msra.mxu0 0.0
    %343 = vmatprep.subr.mxu0 0.0
    %344 = vmatpush1.msra.mxu0 0.0
    %345 = vmatprep.subr.mxu0 0.0
    %346 = vmatpush1.msra.mxu0 0.0
    %347 = vmatprep.subr.mxu0 0.0
    %348 = vmatpush1.msra.mxu0 0.0
    %349 = vmatprep.subr.mxu0 0.0
    %350 = vmatpush1.msra.mxu0 0.0
    %351 = vmatprep.subr.mxu0 0.0
    %352 = vmatpush1.msra.mxu0 0.0
    %353 = vmatprep.subr.mxu0 0.0
    %354 = vmatpush1.msra.mxu0 0.0
    %355 = vmatprep.subr.mxu0 0.0
    %356 = vmatpush1.msra.mxu0 0.0
    %357 = vmatprep.subr.mxu0 0.0
    %358 = vmatpush1.msra.mxu0 0.0
    %359 = vmatprep.subr.mxu0 0.0
    %360 = vmatpush1.msra.mxu0 0.0
    %361 = vmatprep.subr.mxu0 0.0
    %362 = vmatpush1.msra.mxu0 0.0
    %363 = vmatprep.subr.mxu0 0.0
    %364 = vmatpush1.msra.mxu0 0.0
    %365 = vmatprep.subr.mxu0 0.0
    %366 = vmatpush1.msra.mxu0 0.0
    %367 = vmatprep.subr.mxu0 0.0
    %368 = vmatpush1.msra.mxu0 0.0
    %369 = vmatprep.subr.mxu0 0.0
    %370 = vmatpush1.msra.mxu0 0.0
    %371 = vmatprep.subr.mxu0 0.0
    %372 = vmatpush1.msra.mxu0 0.0
    %373 = vmatprep.subr.mxu0 0.0
    %374 = vmatpush1.msra.mxu0 0.0
    %375 = vmatprep.subr.mxu0 0.0
    %376 = vmatpush1.msra.mxu0 0.0
    %377 = vmatprep.mubr.f32.mxu0 0.0
    %378 = vmatmul.mubr.f32.gmra.mrb[0].mxu0 %v213
    %v379 = vpop.f32.mrb[0].mxu0
    %v380 = vadd.f32 0.0, %v379
    %v381 = vpop.f32.mrb[0].mxu0
    %382 = vmatprep.mubr.f32.mxu0 0.0
    %383 = vmatmul.mubr.f32.gmra.mrb[0].mxu0 %v216
    %v384 = vpop.f32.mrb[0].mxu0
    %v385 = vadd.f32 0.0, %v384
    %v386 = vpop.f32.mrb[0].mxu0
    %387 = vmatprep.mubr.f32.mxu0 0.0
    %388 = vmatmul.mubr.f32.gmra.mrb[0].mxu0 %v219
    %v389 = vpop.f32.mrb[0].mxu0
    %v390 = vadd.f32 0.0, %v389
    %v391 = vpop.f32.mrb[0].mxu0
    %392 = vmatprep.mubr.f32.mxu0 0.0
    %393 = vmatmul.mubr.f32.gmra.mrb[0].mxu0 %v222
    %v394 = vpop.f32.mrb[0].mxu0
    %v395 = vadd.f32 0.0, %v394
    %v396 = vpop.f32.mrb[0].mxu0
    %397 = vdwg.mxu0
    %398 = vmatprep.subr.mxu0 0.0
    %399 = vmatpush1.msra.mxu0 %v78
    %400 = vmatprep.subr.mxu0 0.0
    %401 = vmatpush1.msra.mxu0 %v79
    %402 = vmatprep.subr.mxu0 0.0
    %403 = vmatpush1.msra.mxu0 %v80
    %404 = vmatprep.subr.mxu0 0.0
    %405 = vmatpush1.msra.mxu0 %v81
    %406 = vmatprep.subr.mxu0 0.0
    %407 = vmatpush1.msra.mxu0 %v82
    %408 = vmatprep.subr.mxu0 0.0
    %409 = vmatpush1.msra.mxu0 %v83
    %410 = vmatprep.subr.mxu0 0.0
    %411 = vmatpush1.msra.mxu0 %v84
    %412 = vmatprep.subr.mxu0 0.0
    %413 = vmatpush1.msra.mxu0 %v85
    %414 = vmatprep.subr.mxu0 0.0
    %415 = vmatpush1.msra.mxu0 %v86
    %416 = vmatprep.subr.mxu0 0.0
    %417 = vmatpush1.msra.mxu0 %v87
    %418 = vmatprep.subr.mxu0 0.0
    %419 = vmatpush1.msra.mxu0 %v88
    %420 = vmatprep.subr.mxu0 0.0
    %421 = vmatpush1.msra.mxu0 %v89
    %422 = vmatprep.subr.mxu0 0.0
    %423 = vmatpush1.msra.mxu0 0.0
    %424 = vmatprep.subr.mxu0 0.0
    %425 = vmatpush1.msra.mxu0 0.0
    %426 = vmatprep.subr.mxu0 0.0
    %427 = vmatpush1.msra.mxu0 0.0
    %428 = vmatprep.subr.mxu0 0.0
    %429 = vmatpush1.msra.mxu0 0.0
    %430 = vmatprep.subr.mxu0 0.0
    %431 = vmatpush1.msra.mxu0 0.0
    %432 = vmatprep.subr.mxu0 0.0
    %433 = vmatpush1.msra.mxu0 0.0
    %434 = vmatprep.subr.mxu0 0.0
    %435 = vmatpush1.msra.mxu0 0.0
    %436 = vmatprep.subr.mxu0 0.0
    %437 = vmatpush1.msra.mxu0 0.0
    %438 = vmatprep.subr.mxu0 0.0
    %439 = vmatpush1.msra.mxu0 0.0
    %440 = vmatprep.subr.mxu0 0.0
    %441 = vmatpush1.msra.mxu0 0.0
    %442 = vmatprep.subr.mxu0 0.0
    %443 = vmatpush1.msra.mxu0 0.0
    %444 = vmatprep.subr.mxu0 0.0
    %445 = vmatpush1.msra.mxu0 0.0
    %446 = vmatprep.subr.mxu0 0.0
    %447 = vmatpush1.msra.mxu0 0.0
    %448 = vmatprep.subr.mxu0 0.0
    %449 = vmatpush1.msra.mxu0 0.0
    %450 = vmatprep.subr.mxu0 0.0
    %451 = vmatpush1.msra.mxu0 0.0
    %452 = vmatprep.subr.mxu0 0.0
    %453 = vmatpush1.msra.mxu0 0.0
    %454 = vmatprep.subr.mxu0 0.0
    %455 = vmatpush1.msra.mxu0 0.0
    %456 = vmatprep.subr.mxu0 0.0
    %457 = vmatpush1.msra.mxu0 0.0
    %458 = vmatprep.subr.mxu0 0.0
    %459 = vmatpush1.msra.mxu0 0.0
    %460 = vmatprep.subr.mxu0 0.0
    %461 = vmatpush1.msra.mxu0 0.0
    %462 = vmatprep.mubr.f32.mxu0 0.0
    %463 = vmatmul.mubr.f32.gmra.mrb[0].mxu0 %v116
    %v464 = vpop.f32.mrb[0].mxu0
    %v465 = vadd.f32 %v380, %v464
    %v466 = vpop.f32.mrb[0].mxu0
    %467 = vmatprep.mubr.f32.mxu0 0.0
    %468 = vmatmul.mubr.f32.gmra.mrb[0].mxu0 %v119
    %v469 = vpop.f32.mrb[0].mxu0
    %v470 = vadd.f32 %v385, %v469
    %v471 = vpop.f32.mrb[0].mxu0
    %472 = vmatprep.mubr.f32.mxu0 0.0
    %473 = vmatmul.mubr.f32.gmra.mrb[0].mxu0 %v122
    %v474 = vpop.f32.mrb[0].mxu0
    %v475 = vadd.f32 %v390, %v474
    %v476 = vpop.f32.mrb[0].mxu0
    %477 = vmatprep.mubr.f32.mxu0 0.0
    %478 = vmatmul.mubr.f32.gmra.mrb[0].mxu0 %v125
    %v479 = vpop.f32.mrb[0].mxu0
    %v480 = vadd.f32 %v395, %v479
    %v481 = vpop.f32.mrb[0].mxu0
    %482 = vdwg.mxu0
    %v484 = vsel %vm114, %v309, 0
    %v487 = vsel %vm114, %v310, 0
    %v490 = vsel %vm114, %v311, 0
    %v493 = vsel %vm114, %v312, 0
    %495 = vmatprep.subr.mxu0 0.0
    %496 = vmatpush1.msra.mxu0 %v90
    %497 = vmatprep.subr.mxu0 0.0
    %498 = vmatpush1.msra.mxu0 %v91
    %499 = vmatprep.subr.mxu0 0.0
    %500 = vmatpush1.msra.mxu0 %v92
    %501 = vmatprep.subr.mxu0 0.0
    %502 = vmatpush1.msra.mxu0 %v93
    %503 = vmatprep.subr.mxu0 0.0
    %504 = vmatpush1.msra.mxu0 %v94
    %505 = vmatprep.subr.mxu0 0.0
    %506 = vmatpush1.msra.mxu0 %v95
    %507 = vmatprep.subr.mxu0 0.0
    %508 = vmatpush1.msra.mxu0 %v96
    %509 = vmatprep.subr.mxu0 0.0
    %510 = vmatpush1.msra.mxu0 %v97
    %511 = vmatprep.subr.mxu0 0.0
    %512 = vmatpush1.msra.mxu0 %v98
    %513 = vmatprep.subr.mxu0 0.0
    %514 = vmatpush1.msra.mxu0 %v99
    %515 = vmatprep.subr.mxu0 0.0
    %516 = vmatpush1.msra.mxu0 %v100
    %517 = vmatprep.subr.mxu0 0.0
    %518 = vmatpush1.msra.mxu0 %v101
    %519 = vmatprep.subr.mxu0 0.0
    %520 = vmatpush1.msra.mxu0 0.0
    %521 = vmatprep.subr.mxu0 0.0
    %522 = vmatpush1.msra.mxu0 0.0
    %523 = vmatprep.subr.mxu0 0.0
    %524 = vmatpush1.msra.mxu0 0.0
    %525 = vmatprep.subr.mxu0 0.0
    %526 = vmatpush1.msra.mxu0 0.0
    %527 = vmatprep.subr.mxu0 0.0
    %528 = vmatpush1.msra.mxu0 0.0
    %529 = vmatprep.subr.mxu0 0.0
    %530 = vmatpush1.msra.mxu0 0.0
    %531 = vmatprep.subr.mxu0 0.0
    %532 = vmatpush1.msra.mxu0 0.0
    %533 = vmatprep.subr.mxu0 0.0
    %534 = vmatpush1.msra.mxu0 0.0
    %535 = vmatprep.subr.mxu0 0.0
    %536 = vmatpush1.msra.mxu0 0.0
    %537 = vmatprep.subr.mxu0 0.0
    %538 = vmatpush1.msra.mxu0 0.0
    %539 = vmatprep.subr.mxu0 0.0
    %540 = vmatpush1.msra.mxu0 0.0
    %541 = vmatprep.subr.mxu0 0.0
    %542 = vmatpush1.msra.mxu0 0.0
    %543 = vmatprep.subr.mxu0 0.0
    %544 = vmatpush1.msra.mxu0 0.0
    %545 = vmatprep.subr.mxu0 0.0
    %546 = vmatpush1.msra.mxu0 0.0
    %547 = vmatprep.subr.mxu0 0.0
    %548 = vmatpush1.msra.mxu0 0.0
    %549 = vmatprep.subr.mxu0 0.0
    %550 = vmatpush1.msra.mxu0 0.0
    %551 = vmatprep.subr.mxu0 0.0
    %552 = vmatpush1.msra.mxu0 0.0
    %553 = vmatprep.subr.mxu0 0.0
    %554 = vmatpush1.msra.mxu0 0.0
    %555 = vmatprep.subr.mxu0 0.0
    %556 = vmatpush1.msra.mxu0 0.0
    %557 = vmatprep.subr.mxu0 0.0
    %558 = vmatpush1.msra.mxu0 0.0
    %559 = vmatprep.mubr.f32.mxu0 0.0
    %560 = vmatmul.mubr.f32.gmra.mrb[0].mxu0 %v484
    %v561 = vpop.f32.mrb[0].mxu0
    %v562 = vadd.f32 0.0, %v561
    %v563 = vpop.f32.mrb[0].mxu0
    %564 = vmatprep.mubr.f32.mxu0 0.0
    %565 = vmatmul.mubr.f32.gmra.mrb[0].mxu0 %v487
    %v566 = vpop.f32.mrb[0].mxu0
    %v567 = vadd.f32 0.0, %v566
    %v568 = vpop.f32.mrb[0].mxu0
    %569 = vmatprep.mubr.f32.mxu0 0.0
    %570 = vmatmul.mubr.f32.gmra.mrb[0].mxu0 %v490
    %v571 = vpop.f32.mrb[0].mxu0
    %v572 = vadd.f32 0.0, %v571
    %v573 = vpop.f32.mrb[0].mxu0
    %574 = vmatprep.mubr.f32.mxu0 0.0
    %575 = vmatmul.mubr.f32.gmra.mrb[0].mxu0 %v493
    %v576 = vpop.f32.mrb[0].mxu0
    %v577 = vadd.f32 0.0, %v576
    %v578 = vpop.f32.mrb[0].mxu0
    %579 = vdwg.mxu0
    %v581 = vsel %vm114, %v465, 0
    %v584 = vsel %vm114, %v470, 0
    %v587 = vsel %vm114, %v475, 0
    %v590 = vsel %vm114, %v480, 0
    %592 = vmatprep.subr.mxu0 0.0
    %593 = vmatpush1.msra.mxu0 %v102
    %594 = vmatprep.subr.mxu0 0.0
    %595 = vmatpush1.msra.mxu0 %v103
    %596 = vmatprep.subr.mxu0 0.0
    %597 = vmatpush1.msra.mxu0 %v104
    %598 = vmatprep.subr.mxu0 0.0
    %599 = vmatpush1.msra.mxu0 %v105
    %600 = vmatprep.subr.mxu0 0.0
    %601 = vmatpush1.msra.mxu0 %v106
    %602 = vmatprep.subr.mxu0 0.0
    %603 = vmatpush1.msra.mxu0 %v107
    %604 = vmatprep.subr.mxu0 0.0
    %605 = vmatpush1.msra.mxu0 %v108
    %606 = vmatprep.subr.mxu0 0.0
    %607 = vmatpush1.msra.mxu0 %v109
    %608 = vmatprep.subr.mxu0 0.0
    %609 = vmatpush1.msra.mxu0 %v110
    %610 = vmatprep.subr.mxu0 0.0
    %611 = vmatpush1.msra.mxu0 %v111
    %612 = vmatprep.subr.mxu0 0.0
    %613 = vmatpush1.msra.mxu0 %v112
    %614 = vmatprep.subr.mxu0 0.0
    %615 = vmatpush1.msra.mxu0 %v113
    %616 = vmatprep.subr.mxu0 0.0
    %617 = vmatpush1.msra.mxu0 0.0
    %618 = vmatprep.subr.mxu0 0.0
    %619 = vmatpush1.msra.mxu0 0.0
    %620 = vmatprep.subr.mxu0 0.0
    %621 = vmatpush1.msra.mxu0 0.0
    %622 = vmatprep.subr.mxu0 0.0
    %623 = vmatpush1.msra.mxu0 0.0
    %624 = vmatprep.subr.mxu0 0.0
    %625 = vmatpush1.msra.mxu0 0.0
    %626 = vmatprep.subr.mxu0 0.0
    %627 = vmatpush1.msra.mxu0 0.0
    %628 = vmatprep.subr.mxu0 0.0
    %629 = vmatpush1.msra.mxu0 0.0
    %630 = vmatprep.subr.mxu0 0.0
    %631 = vmatpush1.msra.mxu0 0.0
    %632 = vmatprep.subr.mxu0 0.0
    %633 = vmatpush1.msra.mxu0 0.0
    %634 = vmatprep.subr.mxu0 0.0
    %635 = vmatpush1.msra.mxu0 0.0
    %636 = vmatprep.subr.mxu0 0.0
    %637 = vmatpush1.msra.mxu0 0.0
    %638 = vmatprep.subr.mxu0 0.0
    %639 = vmatpush1.msra.mxu0 0.0
    %640 = vmatprep.subr.mxu0 0.0
    %641 = vmatpush1.msra.mxu0 0.0
    %642 = vmatprep.subr.mxu0 0.0
    %643 = vmatpush1.msra.mxu0 0.0
    %644 = vmatprep.subr.mxu0 0.0
    %645 = vmatpush1.msra.mxu0 0.0
    %646 = vmatprep.subr.mxu0 0.0
    %647 = vmatpush1.msra.mxu0 0.0
    %648 = vmatprep.subr.mxu0 0.0
    %649 = vmatpush1.msra.mxu0 0.0
    %650 = vmatprep.subr.mxu0 0.0
    %651 = vmatpush1.msra.mxu0 0.0
    %652 = vmatprep.subr.mxu0 0.0
    %653 = vmatpush1.msra.mxu0 0.0
    %654 = vmatprep.subr.mxu0 0.0
    %655 = vmatpush1.msra.mxu0 0.0
    %656 = vmatprep.mubr.f32.mxu0 0.0
    %657 = vmatmul.mubr.f32.gmra.mrb[0].mxu0 %v581
    %v658 = vpop.f32.mrb[0].mxu0
    %v659 = vadd.f32 0.0, %v658
    %v660 = vpop.f32.mrb[0].mxu0
    %661 = vmatprep.mubr.f32.mxu0 0.0
    %662 = vmatmul.mubr.f32.gmra.mrb[0].mxu0 %v584
    %v663 = vpop.f32.mrb[0].mxu0
    %v664 = vadd.f32 0.0, %v663
    %v665 = vpop.f32.mrb[0].mxu0
    %666 = vmatprep.mubr.f32.mxu0 0.0
    %667 = vmatmul.mubr.f32.gmra.mrb[0].mxu0 %v587
    %v668 = vpop.f32.mrb[0].mxu0
    %v669 = vadd.f32 0.0, %v668
    %v670 = vpop.f32.mrb[0].mxu0
    %671 = vmatprep.mubr.f32.mxu0 0.0
    %672 = vmatmul.mubr.f32.gmra.mrb[0].mxu0 %v590
    %v673 = vpop.f32.mrb[0].mxu0
    %v674 = vadd.f32 0.0, %v673
    %v675 = vpop.f32.mrb[0].mxu0
    %676 = vdwg.mxu0
    %v677 = vsub.f32 %v562, %v659
    %v678 = vsub.f32 %v567, %v664
    %v679 = vsub.f32 %v572, %v669
    %v680 = vsub.f32 %v577, %v674
    %681 = vmatprep.subr.mxu0 0.0
    %682 = vmatpush1.msra.mxu0 %v90
    %683 = vmatprep.subr.mxu0 0.0
    %684 = vmatpush1.msra.mxu0 %v91
    %685 = vmatprep.subr.mxu0 0.0
    %686 = vmatpush1.msra.mxu0 %v92
    %687 = vmatprep.subr.mxu0 0.0
    %688 = vmatpush1.msra.mxu0 %v93
    %689 = vmatprep.subr.mxu0 0.0
    %690 = vmatpush1.msra.mxu0 %v94
    %691 = vmatprep.subr.mxu0 0.0
    %692 = vmatpush1.msra.mxu0 %v95
    %693 = vmatprep.subr.mxu0 0.0
    %694 = vmatpush1.msra.mxu0 %v96
    %695 = vmatprep.subr.mxu0 0.0
    %696 = vmatpush1.msra.mxu0 %v97
    %697 = vmatprep.subr.mxu0 0.0
    %698 = vmatpush1.msra.mxu0 %v98
    %699 = vmatprep.subr.mxu0 0.0
    %700 = vmatpush1.msra.mxu0 %v99
    %701 = vmatprep.subr.mxu0 0.0
    %702 = vmatpush1.msra.mxu0 %v100
    %703 = vmatprep.subr.mxu0 0.0
    %704 = vmatpush1.msra.mxu0 %v101
    %705 = vmatprep.subr.mxu0 0.0
    %706 = vmatpush1.msra.mxu0 0.0
    %707 = vmatprep.subr.mxu0 0.0
    %708 = vmatpush1.msra.mxu0 0.0
    %709 = vmatprep.subr.mxu0 0.0
    %710 = vmatpush1.msra.mxu0 0.0
    %711 = vmatprep.subr.mxu0 0.0
    %712 = vmatpush1.msra.mxu0 0.0
    %713 = vmatprep.subr.mxu0 0.0
    %714 = vmatpush1.msra.mxu0 0.0
    %715 = vmatprep.subr.mxu0 0.0
    %716 = vmatpush1.msra.mxu0 0.0
    %717 = vmatprep.subr.mxu0 0.0
    %718 = vmatpush1.msra.mxu0 0.0
    %719 = vmatprep.subr.mxu0 0.0
    %720 = vmatpush1.msra.mxu0 0.0
    %721 = vmatprep.subr.mxu0 0.0
    %722 = vmatpush1.msra.mxu0 0.0
    %723 = vmatprep.subr.mxu0 0.0
    %724 = vmatpush1.msra.mxu0 0.0
    %725 = vmatprep.subr.mxu0 0.0
    %726 = vmatpush1.msra.mxu0 0.0
    %727 = vmatprep.subr.mxu0 0.0
    %728 = vmatpush1.msra.mxu0 0.0
    %729 = vmatprep.subr.mxu0 0.0
    %730 = vmatpush1.msra.mxu0 0.0
    %731 = vmatprep.subr.mxu0 0.0
    %732 = vmatpush1.msra.mxu0 0.0
    %733 = vmatprep.subr.mxu0 0.0
    %734 = vmatpush1.msra.mxu0 0.0
    %735 = vmatprep.subr.mxu0 0.0
    %736 = vmatpush1.msra.mxu0 0.0
    %737 = vmatprep.subr.mxu0 0.0
    %738 = vmatpush1.msra.mxu0 0.0
    %739 = vmatprep.subr.mxu0 0.0
    %740 = vmatpush1.msra.mxu0 0.0
    %741 = vmatprep.subr.mxu0 0.0
    %742 = vmatpush1.msra.mxu0 0.0
    %743 = vmatprep.subr.mxu0 0.0
    %744 = vmatpush1.msra.mxu0 0.0
    %745 = vmatprep.mubr.f32.mxu0 0.0
    %746 = vmatmul.mubr.f32.gmra.mrb[0].mxu0 %v581
    %v747 = vpop.f32.mrb[0].mxu0
    %v748 = vadd.f32 0.0, %v747
    %v749 = vpop.f32.mrb[0].mxu0
    %750 = vmatprep.mubr.f32.mxu0 0.0
    %751 = vmatmul.mubr.f32.gmra.mrb[0].mxu0 %v584
    %v752 = vpop.f32.mrb[0].mxu0
    %v753 = vadd.f32 0.0, %v752
    %v754 = vpop.f32.mrb[0].mxu0
    %755 = vmatprep.mubr.f32.mxu0 0.0
    %756 = vmatmul.mubr.f32.gmra.mrb[0].mxu0 %v587
    %v757 = vpop.f32.mrb[0].mxu0
    %v758 = vadd.f32 0.0, %v757
    %v759 = vpop.f32.mrb[0].mxu0
    %760 = vmatprep.mubr.f32.mxu0 0.0
    %761 = vmatmul.mubr.f32.gmra.mrb[0].mxu0 %v590
    %v762 = vpop.f32.mrb[0].mxu0
    %v763 = vadd.f32 0.0, %v762
    %v764 = vpop.f32.mrb[0].mxu0
    %765 = vdwg.mxu0
    %766 = vmatprep.subr.mxu0 0.0
    %767 = vmatpush1.msra.mxu0 %v102
    %768 = vmatprep.subr.mxu0 0.0
    %769 = vmatpush1.msra.mxu0 %v103
    %770 = vmatprep.subr.mxu0 0.0
    %771 = vmatpush1.msra.mxu0 %v104
    %772 = vmatprep.subr.mxu0 0.0
    %773 = vmatpush1.msra.mxu0 %v105
    %774 = vmatprep.subr.mxu0 0.0
    %775 = vmatpush1.msra.mxu0 %v106
    %776 = vmatprep.subr.mxu0 0.0
    %777 = vmatpush1.msra.mxu0 %v107
    %778 = vmatprep.subr.mxu0 0.0
    %779 = vmatpush1.msra.mxu0 %v108
    %780 = vmatprep.subr.mxu0 0.0
    %781 = vmatpush1.msra.mxu0 %v109
    %782 = vmatprep.subr.mxu0 0.0
    %783 = vmatpush1.msra.mxu0 %v110
    %784 = vmatprep.subr.mxu0 0.0
    %785 = vmatpush1.msra.mxu0 %v111
    %786 = vmatprep.subr.mxu0 0.0
    %787 = vmatpush1.msra.mxu0 %v112
    %788 = vmatprep.subr.mxu0 0.0
    %789 = vmatpush1.msra.mxu0 %v113
    %790 = vmatprep.subr.mxu0 0.0
    %791 = vmatpush1.msra.mxu0 0.0
    %792 = vmatprep.subr.mxu0 0.0
    %793 = vmatpush1.msra.mxu0 0.0
    %794 = vmatprep.subr.mxu0 0.0
    %795 = vmatpush1.msra.mxu0 0.0
    %796 = vmatprep.subr.mxu0 0.0
    %797 = vmatpush1.msra.mxu0 0.0
    %798 = vmatprep.subr.mxu0 0.0
    %799 = vmatpush1.msra.mxu0 0.0
    %800 = vmatprep.subr.mxu0 0.0
    %801 = vmatpush1.msra.mxu0 0.0
    %802 = vmatprep.subr.mxu0 0.0
    %803 = vmatpush1.msra.mxu0 0.0
    %804 = vmatprep.subr.mxu0 0.0
    %805 = vmatpush1.msra.mxu0 0.0
    %806 = vmatprep.subr.mxu0 0.0
    %807 = vmatpush1.msra.mxu0 0.0
    %808 = vmatprep.subr.mxu0 0.0
    %809 = vmatpush1.msra.mxu0 0.0
    %810 = vmatprep.subr.mxu0 0.0
    %811 = vmatpush1.msra.mxu0 0.0
    %812 = vmatprep.subr.mxu0 0.0
    %813 = vmatpush1.msra.mxu0 0.0
    %814 = vmatprep.subr.mxu0 0.0
    %815 = vmatpush1.msra.mxu0 0.0
    %816 = vmatprep.subr.mxu0 0.0
    %817 = vmatpush1.msra.mxu0 0.0
    %818 = vmatprep.subr.mxu0 0.0
    %819 = vmatpush1.msra.mxu0 0.0
    %820 = vmatprep.subr.mxu0 0.0
    %821 = vmatpush1.msra.mxu0 0.0
    %822 = vmatprep.subr.mxu0 0.0
    %823 = vmatpush1.msra.mxu0 0.0
    %824 = vmatprep.subr.mxu0 0.0
    %825 = vmatpush1.msra.mxu0 0.0
    %826 = vmatprep.subr.mxu0 0.0
    %827 = vmatpush1.msra.mxu0 0.0
    %828 = vmatprep.subr.mxu0 0.0
    %829 = vmatpush1.msra.mxu0 0.0
    %830 = vmatprep.mubr.f32.mxu0 0.0
    %831 = vmatmul.mubr.f32.gmra.mrb[0].mxu0 %v484
    %v832 = vpop.f32.mrb[0].mxu0
    %v833 = vadd.f32 %v748, %v832
    %v834 = vpop.f32.mrb[0].mxu0
    %835 = vmatprep.mubr.f32.mxu0 0.0
    %836 = vmatmul.mubr.f32.gmra.mrb[0].mxu0 %v487
    %v837 = vpop.f32.mrb[0].mxu0
    %v838 = vadd.f32 %v753, %v837
    %v839 = vpop.f32.mrb[0].mxu0
    %840 = vmatprep.mubr.f32.mxu0 0.0
    %841 = vmatmul.mubr.f32.gmra.mrb[0].mxu0 %v490
    %v842 = vpop.f32.mrb[0].mxu0
    %v843 = vadd.f32 %v758, %v842
    %v844 = vpop.f32.mrb[0].mxu0
    %845 = vmatprep.mubr.f32.mxu0 0.0
    %846 = vmatmul.mubr.f32.gmra.mrb[0].mxu0 %v493
    %v847 = vpop.f32.mrb[0].mxu0
    %v848 = vadd.f32 %v763, %v847
    %v849 = vpop.f32.mrb[0].mxu0
    %850 = vdwg.mxu0
    %v851 = vld [vmem:[#allocation2] sm:$0xff]
    %v852 = vld [vmem:[#allocation2 + $0x8] sm:$0xff]
    %v853 = vld [vmem:[#allocation2 + $0x10] sm:$0xff]
    %v854 = vld [vmem:[#allocation2 + $0x18] sm:$0xff]
    %v855 = vsub.f32 %v677, %v851
    %v856 = vsub.f32 %v678, %v852
    %v857 = vsub.f32 %v679, %v853
    %v858 = vsub.f32 %v680, %v854
    %v859 = vld [vmem:[#allocation5] sm:$0xff]
    %v860 = vld [vmem:[#allocation5 + $0x8] sm:$0xff]
    %v861 = vld [vmem:[#allocation5 + $0x10] sm:$0xff]
    %v862 = vld [vmem:[#allocation5 + $0x18] sm:$0xff]
    %v863 = vsub.f32 %v833, %v859
    %v864 = vsub.f32 %v838, %v860
    %v865 = vsub.f32 %v843, %v861
    %v866 = vsub.f32 %v848, %v862
    %v867 = vmul.f32 %v855, %v855
    %v868 = vmul.f32 %v856, %v856
    %v869 = vmul.f32 %v857, %v857
    %v870 = vmul.f32 %v858, %v858
    %v871 = vmul.f32 %v863, %v863
    %v872 = vmul.f32 %v864, %v864
    %v873 = vmul.f32 %v865, %v865
    %v874 = vmul.f32 %v866, %v866
    %v875 = vadd.f32 %v867, %v871
    %v876 = vadd.f32 %v868, %v872
    %v877 = vadd.f32 %v869, %v873
    %v878 = vadd.f32 %v870, %v874
    %vm879 = vcmask 261120
    %v880 = vsel %vm879, %v875, 0.0
    %v881 = vsel %vm879, %v876, 0.0
    %v882 = vadd.f32 %v880, %v881
    %v883 = vsel %vm879, %v877, 0.0
    %v884 = vadd.f32 %v882, %v883
    %v885 = vsel %vm879, %v878, 0.0
    %v886 = vadd.f32 %v884, %v885
    %887 = vadd.xlane.f32.xlu0 %v886
    %v888 = vpop.xlane.xlu0 %887
    %v889 = vrot.slane %v888, 4
    %v890 = vadd.f32 %v888, %v889
    %v891 = vrot.slane %v890, 2
    %v892 = vadd.f32 %v890, %v891
    %v893 = vrot.slane %v892, 1
    %v894 = vadd.f32 %v892, %v893
    %s895 = vtos %v894
    %v896 = vstv %s895
    %vm897 = vcmask 0
    %898 = vst.msk [vmem:[#allocation7] sm:$0x1] %vm897, %v896
    // Predicated region
    $region42: #{tpu_custom_call.1} parent=1 // pred_check
      _
    $region43: #{tpu_custom_call.1} parent=1 // pred_check_branch
      %900 = sbr.rel (0) target = $region45
    $region44: #{tpu_custom_call.1} parent=1 // pred_region
      %s902 = ssub.s32 16, 16
      %903 = vsyncadd [#allocation4], %s902
      %s905 = sshll.u32 [#allocation7], 4
      %s906 = int_to_ptr.vmem [resolvable:$true] %s905
      %908 = dma.vmem_to_hbm [thread:$0]  %s906, 16, %s8, [#allocation4]
    $region45: #{tpu_custom_call.1} parent=1 // pred_fallthru
      _
    // Predicated region
    $region46: #{tpu_custom_call.1} parent=1 // pred_check
      _
    $region47: #{tpu_custom_call.1} parent=1 // pred_check_branch
      %910 = sbr.rel (0) target = $region49
    $region48: #{tpu_custom_call.1} parent=1 // pred_region
      %911 = dma.done [#allocation4], 16
    $region49: #{tpu_custom_call.1} parent=1 // pred_fallthru
      _
    %912 = vsyncpa [#allocation3], 1
    %913 = vsyncpa [#allocation6], 1
    %914 = vsyncpa [#allocation4], 1

</llo_original>
